<compile_context>
chip_gen: v7x
topology: tpu7x:2x2x1
jax: 0.10.0
libtpu: 0.0.40
codegen_flags: <defaults>
</compile_context>

<pallas_src>
import functools
import math

import jax
import jax.numpy as jnp
from jax import lax
from jax.experimental import pallas as pl
from jax.experimental.pallas import tpu as pltpu

EPS = 1e-5
LANE = 128
VMEM_LIMIT = 32 * 1024 * 1024


def _round_up(x, m):
    return (x + m - 1) // m * m


def _nbytes(shape):
    return 4 * math.prod(shape)


def _pad_lanes(a, target):
    pad = target - a.shape[-1]
    if pad == 0:
        return a
    widths = [(0, 0)] * (a.ndim - 1) + [(0, pad)]
    return jnp.pad(a, widths)


def _pick_tile(m):
    for t in (1024, 512, 256, 128, 64, 32, 16, 8):
        if m % t == 0:
            return t
    return m


def _tap_slices(stride, cin_p):
    # stride 1: input row layout (W+2, cin_p); taps start at column dx.
    # stride 2: row is parity-merged to (Wo+1, 2*cin_p): even columns live in
    #           lanes [0, cin_p), odd columns in lanes [cin_p, 2*cin_p).
    if stride == 1:
        return [(0, 0), (1, 0), (2, 0)]
    return [(0, 0), (0, cin_p), (1, 0)]


# ----------------------------- Pallas kernels ------------------------------

def _conv1_kernel(x_ref, w_ref, y_ref, st_ref, acc_ref, *, wo, cin_p, taps):
    """Implicit-GEMM 3x3 conv (bias-free) + per-row BN partial stats."""
    dy = pl.program_id(2)

    @pl.when(dy == 0)
    def _():
        acc_ref[...] = jnp.zeros_like(acc_ref)

    for dx, (off, lo) in enumerate(taps):
        tap = x_ref[0, 0, pl.ds(off, wo), lo:lo + cin_p]          # (wo, cin_p)
        acc_ref[...] += jnp.dot(tap, w_ref[0, dx],
                                preferred_element_type=jnp.float32)

    @pl.when(dy == 2)
    def _():
        y = acc_ref[...]
        # write into the interior of the spatially-padded output row; the
        # border columns/rows are masked out again by the conv2 kernel.
        y_ref[0, 0, pl.ds(1, wo), :] = y
        st_ref[0, 0, 0:1, :] = jnp.sum(y, axis=0, keepdims=True)
        st_ref[0, 0, 1:2, :] = jnp.sum(y * y, axis=0, keepdims=True)


def _conv1_proj_kernel(x_ref, w_ref, ws_ref, y_ref, st_ref, ys_ref, sts_ref,
                       acc_ref, *, wo, cin_p, taps):
    """Same as _conv1_kernel, plus the fused 1x1 projection-shortcut conv
    (computed from the centre tap at dy == 1) and its BN partial stats."""
    dy = pl.program_id(2)

    @pl.when(dy == 0)
    def _():
        acc_ref[...] = jnp.zeros_like(acc_ref)

    for dx, (off, lo) in enumerate(taps):
        tap = x_ref[0, 0, pl.ds(off, wo), lo:lo + cin_p]
        acc_ref[...] += jnp.dot(tap, w_ref[0, dx],
                                preferred_element_type=jnp.float32)

    @pl.when(dy == 1)
    def _():
        off, lo = taps[1]                       # centre column = 1x1-conv input
        ctr = x_ref[0, 0, pl.ds(off, wo), lo:lo + cin_p]
        ys = jnp.dot(ctr, ws_ref[...], preferred_element_type=jnp.float32)
        ys_ref[0, 0] = ys
        sts_ref[0, 0, 0:1, :] = jnp.sum(ys, axis=0, keepdims=True)
        sts_ref[0, 0, 1:2, :] = jnp.sum(ys * ys, axis=0, keepdims=True)

    @pl.when(dy == 2)
    def _():
        y = acc_ref[...]
        y_ref[0, 0, pl.ds(1, wo), :] = y
        st_ref[0, 0, 0:1, :] = jnp.sum(y, axis=0, keepdims=True)
        st_ref[0, 0, 1:2, :] = jnp.sum(y * y, axis=0, keepdims=True)


def _conv2_kernel(a_ref, w_ref, sc_ref, sh_ref, y_ref, st_ref, acc_ref,
                  *, wo, n_rows):
    """3x3 stride-1 implicit GEMM whose input is the *raw* conv1 output:
    BN1 affine + ReLU are applied on the fly (with padding-position masking),
    and BN2 partial stats are emitted with the result."""
    ho = pl.program_id(1)
    dy = pl.program_id(2)

    @pl.when(dy == 0)
    def _():
        acc_ref[...] = jnp.zeros_like(acc_ref)

    hrow = ho + dy                                   # padded row index
    row_ok = jnp.logical_and(hrow > 0, hrow <= n_rows)
    scale = sc_ref[...]
    shift = sh_ref[...]
    for dx in range(3):
        raw = a_ref[0, 0, pl.ds(dx, wo), :]          # (wo, Cp) raw conv1 rows
        col = lax.broadcasted_iota(jnp.int32, (wo, 1), 0) + dx
        ok = jnp.logical_and(row_ok,
                             jnp.logical_and(col >= 1, col <= wo))
        act = jnp.where(ok, jnp.maximum(raw * scale + shift, 0.0), 0.0)
        acc_ref[...] += jnp.dot(act, w_ref[0, dx],
                                preferred_element_type=jnp.float32)

    @pl.when(dy == 2)
    def _():
        y = acc_ref[...]
        y_ref[0, 0] = y
        st_ref[0, 0, 0:1, :] = jnp.sum(y, axis=0, keepdims=True)
        st_ref[0, 0, 1:2, :] = jnp.sum(y * y, axis=0, keepdims=True)


def _bn_add_relu_kernel(y_ref, s_ref, sc2_ref, sh2_ref, scs_ref, shs_ref,
                        o_ref):
    """Final fused epilogue: BN2(y2) + BN_s(shortcut) + ReLU (per-channel
    affines precomputed from the global statistics)."""
    o_ref[...] = jnp.maximum(
        y_ref[...] * sc2_ref[...] + sh2_ref[...]
        + s_ref[...] * scs_ref[...] + shs_ref[...], 0.0)


# ------------------------------ call wrappers -------------------------------

def _conv1_call(xp, w, stride, n, ho, wo, cin_p, cout_p, ws=None):
    wpx, cl = xp.shape[2], xp.shape[3]
    taps = _tap_slices(stride, cin_p)
    grid = (n, ho, 3)

    x_spec = pl.BlockSpec((1, 1, wpx, cl),
                          lambda i, j, d: (i, j * stride + d, 0, 0))
    w_spec = pl.BlockSpec((1, 3, cin_p, cout_p), lambda i, j, d: (d, 0, 0, 0))
    y_spec = pl.BlockSpec((1, 1, wo + 2, cout_p),
                          lambda i, j, d: (i, j + 1, 0, 0))
    st_spec = pl.BlockSpec((1, 1, 2, cout_p), lambda i, j, d: (i, j, 0, 0))

    in_specs = [x_spec, w_spec]
    args = [xp, w]
    out_shape = [jax.ShapeDtypeStruct((n, ho + 2, wo + 2, cout_p), jnp.float32),
                 jax.ShapeDtypeStruct((n, ho, 2, cout_p), jnp.float32)]
    out_specs = [y_spec, st_spec]
    flops = 2 * n * ho * wo * 9 * cin_p * cout_p

    if ws is not None:
        in_specs.append(pl.BlockSpec((cin_p, cout_p), lambda i, j, d: (0, 0)))
        args.append(ws)
        out_shape += [jax.ShapeDtypeStruct((n, ho, wo, cout_p), jnp.float32),
                      jax.ShapeDtypeStruct((n, ho, 2, cout_p), jnp.float32)]
        out_specs += [pl.BlockSpec((1, 1, wo, cout_p),
                                   lambda i, j, d: (i, j, 0, 0)),
                      st_spec]
        kernel = functools.partial(_conv1_proj_kernel, wo=wo, cin_p=cin_p,
                                   taps=taps)
        flops += 2 * n * ho * wo * cin_p * cout_p
    else:
        kernel = functools.partial(_conv1_kernel, wo=wo, cin_p=cin_p,
                                   taps=taps)

    bytes_accessed = (3 * _nbytes(xp.shape) + _nbytes(w.shape)
                      + sum(_nbytes(s.shape) for s in out_shape))

    return pl.pallas_call(
        kernel,
        out_shape=tuple(out_shape),
        grid=grid,
        in_specs=in_specs,
        out_specs=tuple(out_specs),
        scratch_shapes=[pltpu.VMEM((wo, cout_p), jnp.float32)],
        compiler_params=pltpu.CompilerParams(
            dimension_semantics=("parallel", "parallel", "arbitrary"),
            vmem_limit_bytes=VMEM_LIMIT),
        cost_estimate=pl.CostEstimate(flops=flops, transcendentals=0,
                                      bytes_accessed=bytes_accessed),
    )(*args)


def _conv2_call(y1p, w2, scale1, shift1, n, ho, wo, cp):
    grid = (n, ho, 3)
    a_spec = pl.BlockSpec((1, 1, wo + 2, cp), lambda i, j, d: (i, j + d, 0, 0))
    w_spec = pl.BlockSpec((1, 3, cp, cp), lambda i, j, d: (d, 0, 0, 0))
    v_spec = pl.BlockSpec((1, cp), lambda i, j, d: (0, 0))
    y_spec = pl.BlockSpec((1, 1, wo, cp), lambda i, j, d: (i, j, 0, 0))
    st_spec = pl.BlockSpec((1, 1, 2, cp), lambda i, j, d: (i, j, 0, 0))

    flops = 2 * n * ho * wo * 9 * cp * cp
    bytes_accessed = (3 * _nbytes(y1p.shape) + _nbytes(w2.shape)
                      + _nbytes((n, ho, wo, cp)) + _nbytes((n, ho, 2, cp)))

    return pl.pallas_call(
        functools.partial(_conv2_kernel, wo=wo, n_rows=ho),
        out_shape=(jax.ShapeDtypeStruct((n, ho, wo, cp), jnp.float32),
                   jax.ShapeDtypeStruct((n, ho, 2, cp), jnp.float32)),
        grid=grid,
        in_specs=[a_spec, w_spec, v_spec, v_spec],
        out_specs=(y_spec, st_spec),
        scratch_shapes=[pltpu.VMEM((wo, cp), jnp.float32)],
        compiler_params=pltpu.CompilerParams(
            dimension_semantics=("parallel", "parallel", "arbitrary"),
            vmem_limit_bytes=VMEM_LIMIT),
        cost_estimate=pl.CostEstimate(flops=flops, transcendentals=0,
                                      bytes_accessed=bytes_accessed),
    )(y1p, w2, scale1, shift1)


def _bn_add_relu_call(y2, shortcut, sc2, sh2, scs, shs):
    m, cp = y2.shape
    tm = _pick_tile(m)
    row_spec = pl.BlockSpec((tm, cp), lambda i: (i, 0))
    vec_spec = pl.BlockSpec((1, cp), lambda i: (0, 0))
    return pl.pallas_call(
        _bn_add_relu_kernel,
        out_shape=jax.ShapeDtypeStruct((m, cp), jnp.float32),
        grid=(m // tm,),
        in_specs=[row_spec, row_spec, vec_spec, vec_spec, vec_spec, vec_spec],
        out_specs=row_spec,
        compiler_params=pltpu.CompilerParams(
            dimension_semantics=("parallel",),
            vmem_limit_bytes=VMEM_LIMIT),
    )(y2, shortcut, sc2, sh2, scs, shs)


# ------------------------------- host glue ----------------------------------

def _prep_w3x3(w, cin_p, cout_p):
    w = jnp.transpose(w, (2, 3, 1, 0))             # OIHW -> (kh, kw, Cin, Cout)
    return jnp.pad(w, ((0, 0), (0, 0),
                       (0, cin_p - w.shape[2]), (0, cout_p - w.shape[3])))


def _affine_from_stats(stats, gamma, beta, m):
    # stats: (N, Ho, 2, Cp) per-row partial [sum, sum-of-squares]
    tot = jnp.sum(stats, axis=(0, 1))              # (2, Cp)
    mean = tot[0] / m
    var = jnp.maximum(tot[1] / m - mean * mean, 0.0)   # biased variance
    scale = gamma * lax.rsqrt(var + EPS)           # (1, Cp)
    shift = beta - mean * scale
    return scale, shift


def residual_block_forward(x_nchw, params, stride):
    assert stride in (1, 2), "ResNet basic block uses stride 1 or 2"
    x = jnp.transpose(x_nchw, (0, 2, 3, 1)).astype(jnp.float32)   # NHWC
    n, h, w, cin = x.shape
    cout = params["w1"].shape[0]
    ho = (h + 2 - 3) // stride + 1
    wo = (w + 2 - 3) // stride + 1
    cin_p = _round_up(cin, LANE)
    cp = _round_up(cout, LANE)
    m = n * ho * wo

    # ---- cheap (input-sized) layout prep ------------------------------
    xc = _pad_lanes(x, cin_p)                                  # lane-dense NHWC
    xp = jnp.pad(xc, ((0, 0), (1, 1), (1, 1), (0, 0)))         # spatial zero-pad
    if stride == 2:
        # Parity-merge W into the lane axis so strided taps become contiguous,
        # 128-aligned lane slices inside the kernel.
        wpp = 2 * (wo + 1)
        xp = jnp.pad(xp, ((0, 0), (0, 0), (0, wpp - xp.shape[2]), (0, 0)))
        xp = xp.reshape(n, h + 2, wo + 1, 2 * cin_p)

    w1 = _prep_w3x3(params["w1"], cin_p, cp)
    w2 = _prep_w3x3(params["w2"], cp, cp)
    g1 = _pad_lanes(params["g1"][None, :], cp)
    b1 = _pad_lanes(params["be1"][None, :], cp)
    g2 = _pad_lanes(params["g2"][None, :], cp)
    b2 = _pad_lanes(params["be2"][None, :], cp)

    proj = (cin != cout) or (stride != 1)

    # ---- pass 1: conv1 (+ fused projection shortcut) + BN partial stats ----
    # Note: the conv biases b1/b2/bs are intentionally NOT added - a
    # per-channel bias is exactly cancelled by training-mode BatchNorm.
    if proj:
        ws = params["ws"][:, :, 0, 0].T                        # (Cin, Cout)
        ws = jnp.pad(ws, ((0, cin_p - cin), (0, cp - cout)))
        y1p, st1, ys, sts = _conv1_call(xp, w1, stride, n, ho, wo,
                                        cin_p, cp, ws=ws)
        gs = _pad_lanes(params["gs"][None, :], cp)
        bs = _pad_lanes(params["bes"][None, :], cp)
        sc_s, sh_s = _affine_from_stats(sts, gs, bs, m)
        shortcut = ys.reshape(m, cp)
    else:
        y1p, st1 = _conv1_call(xp, w1, stride, n, ho, wo, cin_p, cp)
        sc_s = jnp.ones((1, cp), jnp.float32)
        sh_s = jnp.zeros((1, cp), jnp.float32)
        shortcut = xc.reshape(m, cp)

    sc1, sh1 = _affine_from_stats(st1, g1, b1, m)

    # ---- pass 2: conv2 with fused BN1+ReLU on its input, + BN2 stats -------
    y2, st2 = _conv2_call(y1p, w2, sc1, sh1, n, ho, wo, cp)
    sc2, sh2 = _affine_from_stats(st2, g2, b2, m)

    # ---- pass 3: BN2 + shortcut-BN + add + ReLU (single fused kernel) ------
    out = _bn_add_relu_call(y2.reshape(m, cp), shortcut, sc2, sh2, sc_s, sh_s)
    out = out.reshape(n, ho, wo, cp)[:, :, :, :cout]
    return jnp.transpose(out, (0, 3, 1, 2))                    # back to NCHW


# ---------------------------- pure-JAX reference -----------------------------

def _ref_forward(x_nchw, params, stride):
    def conv(x, wgt, b, s, p):
        y = lax.conv_general_dilated(
            x, wgt, (s, s), [(p, p), (p, p)],
            dimension_numbers=("NCHW", "OIHW", "NCHW"))
        return y + b.reshape(1, -1, 1, 1)

    def bn(x, g, be):
        mean = jnp.mean(x, axis=(0, 2, 3), keepdims=True)
        var = jnp.mean(jnp.square(x - mean), axis=(0, 2, 3), keepdims=True)
        return ((x - mean) * lax.rsqrt(var + EPS) * g.reshape(1, -1, 1, 1)
                + be.reshape(1, -1, 1, 1))

    cin = x_nchw.shape[1]
    cout = params["w1"].shape[0]
    if cin != cout or stride != 1:
        sc = bn(conv(x_nchw, params["ws"], params["bs"], stride, 0),
                params["gs"], params["bes"])
    else:
        sc = x_nchw
    hdd = jnp.maximum(bn(conv(x_nchw, params["w1"], params["b1"], stride, 1),
                         params["g1"], params["be1"]), 0.0)
    hdd = bn(conv(hdd, params["w2"], params["b2"], 1, 1),
             params["g2"], params["be2"])
    return jnp.maximum(hdd + sc, 0.0)


def _make_params(key, cin, cout, proj):
    ks = jax.random.split(key, 12)
    p = {
        "w1": 0.1 * jax.random.normal(ks[0], (cout, cin, 3, 3), jnp.float32),
        "b1": 0.05 * jax.random.normal(ks[1], (cout,), jnp.float32),
        "g1": 1.0 + 0.1 * jax.random.normal(ks[2], (cout,), jnp.float32),
        "be1": 0.1 * jax.random.normal(ks[3], (cout,), jnp.float32),
        "w2": 0.1 * jax.random.normal(ks[4], (cout, cout, 3, 3), jnp.float32),
        "b2": 0.05 * jax.random.normal(ks[5], (cout,), jnp.float32),
        "g2": 1.0 + 0.1 * jax.random.normal(ks[6], (cout,), jnp.float32),
        "be2": 0.1 * jax.random.normal(ks[7], (cout,), jnp.float32),
    }
    if proj:
        p.update({
            "ws": 0.1 * jax.random.normal(ks[8], (cout, cin, 1, 1), jnp.float32),
            "bs": 0.05 * jax.random.normal(ks[9], (cout,), jnp.float32),
            "gs": 1.0 + 0.1 * jax.random.normal(ks[10], (cout,), jnp.float32),
            "bes": 0.1 * jax.random.normal(ks[11], (cout,), jnp.float32),
        })
    return p


# ----------------------------------- main ------------------------------------

if __name__ == "__main__":
    key = jax.random.PRNGKey(0)
    k1, k2, kx1, kx2 = jax.random.split(key, 4)

    # Case 1: projection shortcut (stride 2, channel change).
    n, cin, cout, h, w, stride = 2, 4, 8, 16, 16, 2
    params = _make_params(k1, cin, cout, proj=True)
    x = jax.random.normal(kx1, (n, cin, h, w), jnp.float32)
    out = jax.block_until_ready(residual_block_forward(x, params, stride))
    ref = jax.block_until_ready(_ref_forward(x, params, stride))
    assert out.shape == ref.shape == (n, cout, h // stride, w // stride)
    err1 = float(jnp.max(jnp.abs(out - ref)))
    assert err1 < 2e-4, err1

    # Case 2: identity shortcut (stride 1, same channels).
    n, cin, cout, h, w, stride = 2, 8, 8, 16, 16, 1
    params = _make_params(k2, cin, cout, proj=False)
    x = jax.random.normal(kx2, (n, cin, h, w), jnp.float32)
    out = jax.block_until_ready(residual_block_forward(x, params, stride))
    ref = jax.block_until_ready(_ref_forward(x, params, stride))
    assert out.shape == ref.shape == (n, cout, h, w)
    err2 = float(jnp.max(jnp.abs(out - ref)))
    assert err2 < 2e-4, err2

    print("KERNEL_OK")
</pallas_src>

<mosaic_0001>
module attributes {stable_mosaic.version = 11 : i64} {
  func.func @_conv1_proj_kernel(%arg0: i32, %arg1: i32, %arg2: i32, %arg3: memref<1x1x9x256xf32, #tpu.memory_space<vmem>>, %arg4: memref<1x3x128x128xf32, #tpu.memory_space<vmem>>, %arg5: memref<128x128xf32, #tpu.memory_space<vmem>>, %arg6: memref<1x1x10x128xf32, #tpu.memory_space<vmem>>, %arg7: memref<1x1x2x128xf32, #tpu.memory_space<vmem>>, %arg8: memref<1x1x8x128xf32, #tpu.memory_space<vmem>>, %arg9: memref<1x1x2x128xf32, #tpu.memory_space<vmem>>, %arg10: memref<8x128xf32, #tpu.memory_space<vmem>>) attributes {dimension_semantics = [#tpu.dimension_semantics<parallel>, #tpu.dimension_semantics<parallel>, #tpu.dimension_semantics<arbitrary>], iteration_bounds = array<i64: 2, 8, 3>, scalar_prefetch = 0 : i64, scratch_operands = 1 : i64, tpu.core_type = #tpu.core_type<tc>, window_params = [{transform_indices = @transform_0, window_bounds = array<i64: 1, 1, 9, 256>}, {transform_indices = @transform_1, window_bounds = array<i64: 1, 3, 128, 128>}, {pipeline_mode = #tpu.pipeline_mode<synchronous>, transform_indices = @transform_2, window_bounds = array<i64: 128, 128>}, {transform_indices = @transform_3, window_bounds = array<i64: 1, 1, 10, 128>}, {transform_indices = @transform_4, window_bounds = array<i64: 1, 1, 2, 128>}, {transform_indices = @transform_5, window_bounds = array<i64: 1, 1, 8, 128>}, {transform_indices = @transform_6, window_bounds = array<i64: 1, 1, 2, 128>}]} {
    %c0_i32 = arith.constant 0 : i32
    %0 = arith.cmpi eq, %arg2, %c0_i32 : i32
    %1 = arith.extui %0 : i1 to i32
    %c0_i32_0 = arith.constant 0 : i32
    %2 = arith.cmpi ne, %1, %c0_i32_0 : i32
    scf.if %2 {
      %cst_37 = arith.constant 0.000000e+00 : f32
      %33 = vector.broadcast %cst_37 : f32 to vector<8x128xf32>
      %c0_38 = arith.constant 0 : index
      %c0_39 = arith.constant 0 : index
      %34 = vector.load %arg10[%c0_38, %c0_39] : memref<8x128xf32, #tpu.memory_space<vmem>>, vector<8x128xf32>
      tpu.vector_store %arg10[%c0_38, %c0_39], %33 {strides = array<i32>} : memref<8x128xf32, #tpu.memory_space<vmem>>, vector<8x128xf32>,
    } else {
    }
    %c0 = arith.constant 0 : index
    %c0_1 = arith.constant 0 : index
    %c0_2 = arith.constant 0 : index
    %c0_3 = arith.constant 0 : index
    %3 = vector.load %arg3[%c0, %c0_1, %c0_2, %c0_3] : memref<1x1x9x256xf32, #tpu.memory_space<vmem>>, vector<1x1x8x128xf32>
    %4 = vector.shape_cast %3 : vector<1x1x8x128xf32> to vector<8x128xf32>
    %c0_4 = arith.constant 0 : index
    %c0_5 = arith.constant 0 : index
    %5 = vector.load %arg10[%c0_4, %c0_5] : memref<8x128xf32, #tpu.memory_space<vmem>>, vector<8x128xf32>
    %c0_6 = arith.constant 0 : index
    %c0_7 = arith.constant 0 : index
    %c0_8 = arith.constant 0 : index
    %c0_9 = arith.constant 0 : index
    %6 = vector.load %arg4[%c0_6, %c0_7, %c0_8, %c0_9] : memref<1x3x128x128xf32, #tpu.memory_space<vmem>>, vector<1x1x128x128xf32>
    %7 = vector.shape_cast %6 : vector<1x1x128x128xf32> to vector<128x128xf32>
    %cst = arith.constant dense<0.000000e+00> : vector<8x128xf32>
    %8 = tpu.matmul %4, %7, %cst {dimension_numbers = #tpu.dot_dimension_numbers<[1], [0], [0], [1], [0, 0, 1, 1], [], []>} : vector<8x128xf32>, vector<128x128xf32>, vector<8x128xf32> -> vector<8x128xf32>
    %9 = arith.addf %5, %8 : vector<8x128xf32>
    %c0_10 = arith.constant 0 : index
    %c0_11 = arith.constant 0 : index
    %10 = vector.load %arg10[%c0_10, %c0_11] : memref<8x128xf32, #tpu.memory_space<vmem>>, vector<8x128xf32>
    tpu.vector_store %arg10[%c0_10, %c0_11], %9 {strides = array<i32>} : memref<8x128xf32, #tpu.memory_space<vmem>>, vector<8x128xf32>,
    %c0_12 = arith.constant 0 : index
    %c0_13 = arith.constant 0 : index
    %c0_14 = arith.constant 0 : index
    %c128 = arith.constant 128 : index
    %11 = vector.load %arg3[%c0_12, %c0_13, %c0_14, %c128] : memref<1x1x9x256xf32, #tpu.memory_space<vmem>>, vector<1x1x8x128xf32>
    %12 = vector.shape_cast %11 : vector<1x1x8x128xf32> to vector<8x128xf32>
    %c0_15 = arith.constant 0 : index
    %c0_16 = arith.constant 0 : index
    %13 = vector.load %arg10[%c0_15, %c0_16] : memref<8x128xf32, #tpu.memory_space<vmem>>, vector<8x128xf32>
    %c0_17 = arith.constant 0 : index
    %c1 = arith.constant 1 : index
    %c0_18 = arith.constant 0 : index
    %c0_19 = arith.constant 0 : index
    %14 = vector.load %arg4[%c0_17, %c1, %c0_18, %c0_19] : memref<1x3x128x128xf32, #tpu.memory_space<vmem>>, vector<1x1x128x128xf32>
    %15 = vector.shape_cast %14 : vector<1x1x128x128xf32> to vector<128x128xf32>
    %cst_20 = arith.constant dense<0.000000e+00> : vector<8x128xf32>
    %16 = tpu.matmul %12, %15, %cst_20 {dimension_numbers = #tpu.dot_dimension_numbers<[1], [0], [0], [1], [0, 0, 1, 1], [], []>} : vector<8x128xf32>, vector<128x128xf32>, vector<8x128xf32> -> vector<8x128xf32>
    %17 = arith.addf %13, %16 : vector<8x128xf32>
    %c0_21 = arith.constant 0 : index
    %c0_22 = arith.constant 0 : index
    %18 = vector.load %arg10[%c0_21, %c0_22] : memref<8x128xf32, #tpu.memory_space<vmem>>, vector<8x128xf32>
    tpu.vector_store %arg10[%c0_21, %c0_22], %17 {strides = array<i32>} : memref<8x128xf32, #tpu.memory_space<vmem>>, vector<8x128xf32>,
    %c0_23 = arith.constant 0 : index
    %c0_24 = arith.constant 0 : index
    %c1_25 = arith.constant 1 : index
    %c0_26 = arith.constant 0 : index
    %19 = vector.load %arg3[%c0_23, %c0_24, %c1_25, %c0_26] : memref<1x1x9x256xf32, #tpu.memory_space<vmem>>, vector<1x1x8x128xf32>
    %20 = vector.shape_cast %19 : vector<1x1x8x128xf32> to vector<8x128xf32>
    %c0_27 = arith.constant 0 : index
    %c0_28 = arith.constant 0 : index
    %21 = vector.load %arg10[%c0_27, %c0_28] : memref<8x128xf32, #tpu.memory_space<vmem>>, vector<8x128xf32>
    %c0_29 = arith.constant 0 : index
    %c2 = arith.constant 2 : index
    %c0_30 = arith.constant 0 : index
    %c0_31 = arith.constant 0 : index
    %22 = vector.load %arg4[%c0_29, %c2, %c0_30, %c0_31] : memref<1x3x128x128xf32, #tpu.memory_space<vmem>>, vector<1x1x128x128xf32>
    %23 = vector.shape_cast %22 : vector<1x1x128x128xf32> to vector<128x128xf32>
    %cst_32 = arith.constant dense<0.000000e+00> : vector<8x128xf32>
    %24 = tpu.matmul %20, %23, %cst_32 {dimension_numbers = #tpu.dot_dimension_numbers<[1], [0], [0], [1], [0, 0, 1, 1], [], []>} : vector<8x128xf32>, vector<128x128xf32>, vector<8x128xf32> -> vector<8x128xf32>
    %25 = arith.addf %21, %24 : vector<8x128xf32>
    %c0_33 = arith.constant 0 : index
    %c0_34 = arith.constant 0 : index
    %26 = vector.load %arg10[%c0_33, %c0_34] : memref<8x128xf32, #tpu.memory_space<vmem>>, vector<8x128xf32>
    tpu.vector_store %arg10[%c0_33, %c0_34], %25 {strides = array<i32>} : memref<8x128xf32, #tpu.memory_space<vmem>>, vector<8x128xf32>,
    %c1_i32 = arith.constant 1 : i32
    %27 = arith.cmpi eq, %arg2, %c1_i32 : i32
    %28 = arith.extui %27 : i1 to i32
    %c0_i32_35 = arith.constant 0 : i32
    %29 = arith.cmpi ne, %28, %c0_i32_35 : i32
    scf.if %29 {
      %c0_37 = arith.constant 0 : index
      %c0_38 = arith.constant 0 : index
      %c0_39 = arith.constant 0 : index
      %c128_40 = arith.constant 128 : index
      %33 = vector.load %arg3[%c0_37, %c0_38, %c0_39, %c128_40] : memref<1x1x9x256xf32, #tpu.memory_space<vmem>>, vector<1x1x8x128xf32>
      %34 = vector.shape_cast %33 : vector<1x1x8x128xf32> to vector<8x128xf32>
      %c0_41 = arith.constant 0 : index
      %c0_42 = arith.constant 0 : index
      %35 = vector.load %arg5[%c0_41, %c0_42] : memref<128x128xf32, #tpu.memory_space<vmem>>, vector<128x128xf32>
      %cst_43 = arith.constant dense<0.000000e+00> : vector<8x128xf32>
      %36 = tpu.matmul %34, %35, %cst_43 {dimension_numbers = #tpu.dot_dimension_numbers<[1], [0], [0], [1], [0, 0, 1, 1], [], []>} : vector<8x128xf32>, vector<128x128xf32>, vector<8x128xf32> -> vector<8x128xf32>
      %c0_44 = arith.constant 0 : index
      %c0_45 = arith.constant 0 : index
      %c0_46 = arith.constant 0 : index
      %c0_47 = arith.constant 0 : index
      %37 = vector.load %arg8[%c0_44, %c0_45, %c0_46, %c0_47] : memref<1x1x8x128xf32, #tpu.memory_space<vmem>>, vector<1x1x8x128xf32>
      %38 = vector.shape_cast %37 : vector<1x1x8x128xf32> to vector<8x128xf32>
      %39 = vector.shape_cast %36 : vector<8x128xf32> to vector<1x1x8x128xf32>
      tpu.vector_store %arg8[%c0_44, %c0_45, %c0_46, %c0_47], %39 {strides = array<i32>} : memref<1x1x8x128xf32, #tpu.memory_space<vmem>>, vector<1x1x8x128xf32>,
      %cst_48 = arith.constant dense<0.000000e+00> : vector<128xf32>
      %40 = vector.multi_reduction <add>, %36, %cst_48 [0] : vector<8x128xf32> to vector<128xf32>
      %41 = vector.shape_cast %40 : vector<128xf32> to vector<1x128xf32>
      %c0_49 = arith.constant 0 : index
      %c0_50 = arith.constant 0 : index
      %c0_51 = arith.constant 0 : index
      %c0_52 = arith.constant 0 : index
      %42 = vector.load %arg9[%c0_49, %c0_50, %c0_51, %c0_52] : memref<1x1x2x128xf32, #tpu.memory_space<vmem>>, vector<1x1x1x128xf32>
      %43 = vector.shape_cast %42 : vector<1x1x1x128xf32> to vector<1x128xf32>
      %44 = vector.shape_cast %41 : vector<1x128xf32> to vector<1x1x1x128xf32>
      tpu.vector_store %arg9[%c0_49, %c0_50, %c0_51, %c0_52], %44 {strides = array<i32>} : memref<1x1x2x128xf32, #tpu.memory_space<vmem>>, vector<1x1x1x128xf32>,
      %45 = arith.mulf %36, %36 : vector<8x128xf32>
      %cst_53 = arith.constant dense<0.000000e+00> : vector<128xf32>
      %46 = vector.multi_reduction <add>, %45, %cst_53 [0] : vector<8x128xf32> to vector<128xf32>
      %47 = vector.shape_cast %46 : vector<128xf32> to vector<1x128xf32>
      %c0_54 = arith.constant 0 : index
      %c0_55 = arith.constant 0 : index
      %c1_56 = arith.constant 1 : index
      %c0_57 = arith.constant 0 : index
      %48 = vector.load %arg9[%c0_54, %c0_55, %c1_56, %c0_57] : memref<1x1x2x128xf32, #tpu.memory_space<vmem>>, vector<1x1x1x128xf32>
      %49 = vector.shape_cast %48 : vector<1x1x1x128xf32> to vector<1x128xf32>
      %50 = vector.shape_cast %47 : vector<1x128xf32> to vector<1x1x1x128xf32>
      tpu.vector_store %arg9[%c0_54, %c0_55, %c1_56, %c0_57], %50 {strides = array<i32>} : memref<1x1x2x128xf32, #tpu.memory_space<vmem>>, vector<1x1x1x128xf32>,
    } else {
    }
    %c2_i32 = arith.constant 2 : i32
    %30 = arith.cmpi eq, %arg2, %c2_i32 : i32
    %31 = arith.extui %30 : i1 to i32
    %c0_i32_36 = arith.constant 0 : i32
    %32 = arith.cmpi ne, %31, %c0_i32_36 : i32
    scf.if %32 {
      %c0_37 = arith.constant 0 : index
      %c0_38 = arith.constant 0 : index
      %33 = vector.load %arg10[%c0_37, %c0_38] : memref<8x128xf32, #tpu.memory_space<vmem>>, vector<8x128xf32>
      %c0_39 = arith.constant 0 : index
      %c0_40 = arith.constant 0 : index
      %c1_41 = arith.constant 1 : index
      %c0_42 = arith.constant 0 : index
      %34 = vector.load %arg6[%c0_39, %c0_40, %c1_41, %c0_42] : memref<1x1x10x128xf32, #tpu.memory_space<vmem>>, vector<1x1x8x128xf32>
      %35 = vector.shape_cast %34 : vector<1x1x8x128xf32> to vector<8x128xf32>
      %36 = vector.shape_cast %33 : vector<8x128xf32> to vector<1x1x8x128xf32>
      tpu.vector_store %arg6[%c0_39, %c0_40, %c1_41, %c0_42], %36 {strides = array<i32>} : memref<1x1x10x128xf32, #tpu.memory_space<vmem>>, vector<1x1x8x128xf32>,
      %cst_43 = arith.constant dense<0.000000e+00> : vector<128xf32>
      %37 = vector.multi_reduction <add>, %33, %cst_43 [0] : vector<8x128xf32> to vector<128xf32>
      %38 = vector.shape_cast %37 : vector<128xf32> to vector<1x128xf32>
      %c0_44 = arith.constant 0 : index
      %c0_45 = arith.constant 0 : index
      %c0_46 = arith.constant 0 : index
      %c0_47 = arith.constant 0 : index
      %39 = vector.load %arg7[%c0_44, %c0_45, %c0_46, %c0_47] : memref<1x1x2x128xf32, #tpu.memory_space<vmem>>, vector<1x1x1x128xf32>
      %40 = vector.shape_cast %39 : vector<1x1x1x128xf32> to vector<1x128xf32>
      %41 = vector.shape_cast %38 : vector<1x128xf32> to vector<1x1x1x128xf32>
      tpu.vector_store %arg7[%c0_44, %c0_45, %c0_46, %c0_47], %41 {strides = array<i32>} : memref<1x1x2x128xf32, #tpu.memory_space<vmem>>, vector<1x1x1x128xf32>,
      %42 = arith.mulf %33, %33 : vector<8x128xf32>
      %cst_48 = arith.constant dense<0.000000e+00> : vector<128xf32>
      %43 = vector.multi_reduction <add>, %42, %cst_48 [0] : vector<8x128xf32> to vector<128xf32>
      %44 = vector.shape_cast %43 : vector<128xf32> to vector<1x128xf32>
      %c0_49 = arith.constant 0 : index
      %c0_50 = arith.constant 0 : index
      %c1_51 = arith.constant 1 : index
      %c0_52 = arith.constant 0 : index
      %45 = vector.load %arg7[%c0_49, %c0_50, %c1_51, %c0_52] : memref<1x1x2x128xf32, #tpu.memory_space<vmem>>, vector<1x1x1x128xf32>
      %46 = vector.shape_cast %45 : vector<1x1x1x128xf32> to vector<1x128xf32>
      %47 = vector.shape_cast %44 : vector<1x128xf32> to vector<1x1x1x128xf32>
      tpu.vector_store %arg7[%c0_49, %c0_50, %c1_51, %c0_52], %47 {strides = array<i32>} : memref<1x1x2x128xf32, #tpu.memory_space<vmem>>, vector<1x1x1x128xf32>,
    } else {
    }
    return
  }
  func.func @transform_0(%arg0: i32, %arg1: i32, %arg2: i32) -> (i32, i32, i32, i32) {
    %c2_i32 = arith.constant 2 : i32
    %0 = arith.muli %arg1, %c2_i32 : i32
    %1 = arith.addi %0, %arg2 : i32
    %c0_i32 = arith.constant 0 : i32
    %c0_i32_0 = arith.constant 0 : i32
    %c0_i32_1 = arith.constant 0 : i32
    return %arg0, %1, %c0_i32, %c0_i32_0 : i32, i32, i32, i32
  }
  func.func @transform_1(%arg0: i32, %arg1: i32, %arg2: i32) -> (i32, i32, i32, i32) {
    %c0_i32 = arith.constant 0 : i32
    %c0_i32_0 = arith.constant 0 : i32
    %c0_i32_1 = arith.constant 0 : i32
    %c0_i32_2 = arith.constant 0 : i32
    return %arg2, %c0_i32, %c0_i32_0, %c0_i32_1 : i32, i32, i32, i32
  }
  func.func @transform_2(%arg0: i32, %arg1: i32, %arg2: i32) -> (i32, i32) {
    %c0_i32 = arith.constant 0 : i32
    %c0_i32_0 = arith.constant 0 : i32
    %c0_i32_1 = arith.constant 0 : i32
    return %c0_i32, %c0_i32_0 : i32, i32
  }
  func.func @transform_3(%arg0: i32, %arg1: i32, %arg2: i32) -> (i32, i32, i32, i32) {
    %c1_i32 = arith.constant 1 : i32
    %0 = arith.addi %arg1, %c1_i32 : i32
    %c0_i32 = arith.constant 0 : i32
    %c0_i32_0 = arith.constant 0 : i32
    %c0_i32_1 = arith.constant 0 : i32
    return %arg0, %0, %c0_i32, %c0_i32_0 : i32, i32, i32, i32
  }
  func.func @transform_4(%arg0: i32, %arg1: i32, %arg2: i32) -> (i32, i32, i32, i32) {
    %c0_i32 = arith.constant 0 : i32
    %c0_i32_0 = arith.constant 0 : i32
    %c0_i32_1 = arith.constant 0 : i32
    return %arg0, %arg1, %c0_i32, %c0_i32_0 : i32, i32, i32, i32
  }
  func.func @transform_5(%arg0: i32, %arg1: i32, %arg2: i32) -> (i32, i32, i32, i32) {
    %c0_i32 = arith.constant 0 : i32
    %c0_i32_0 = arith.constant 0 : i32
    %c0_i32_1 = arith.constant 0 : i32
    return %arg0, %arg1, %c0_i32, %c0_i32_0 : i32, i32, i32, i32
  }
  func.func @transform_6(%arg0: i32, %arg1: i32, %arg2: i32) -> (i32, i32, i32, i32) {
    %c0_i32 = arith.constant 0 : i32
    %c0_i32_0 = arith.constant 0 : i32
    %c0_i32_1 = arith.constant 0 : i32
    return %arg0, %arg1, %c0_i32, %c0_i32_0 : i32, i32, i32, i32
  }
}

</mosaic_0001>

<llo_original>
// kernel: tpu_custom_call.1
$region0: #{tpu_custom_call.1}
  #allocation0 [shape = 'u32[]', space=smem, size = 0x4, offset = 0x4, fixed_abs, tag = 'smem constant byte address 0x4 - core index']
  #allocation1 [shape = 'u32[144,128]{1,0:T(1,128)}', space=vmem, size = 0x12000, scoped, tag = 'internal scratch']
  #allocation2 [shape = 'f32[8,128]{1,0:T(8,128)}', space=vmem, size = 0x1000, scoped, tag = 'scratch operand']
  %s0 = inlined_call_operand.vmem [shape: f32[2,18,9,256], index: 0, kind: input, shape index: {}]
  %s1 = inlined_call_operand.vmem [shape: f32[3,3,128,128], index: 1, kind: input, shape index: {}]
  %s2 = inlined_call_operand.vmem [shape: f32[128,128], index: 2, kind: input, shape index: {}]
  %s3 = inlined_call_operand.vmem [shape: f32[2,10,10,128], index: 3, kind: output, shape index: {0}]
  %s4 = inlined_call_operand.hbm [shape: f32[2,8,2,128], index: 4, kind: output, shape index: {1}]
  %s5 = inlined_call_operand.hbm [shape: f32[2,8,8,128], index: 5, kind: output, shape index: {2}]
  %s6 = inlined_call_operand.hbm [shape: f32[2,8,2,128], index: 6, kind: output, shape index: {3}]
  %7 = xla_tuple %s3, %s4, %s5, %s6
  %s8 = sld [smem:[#allocation0]]
  $region81: #{tpu_custom_call.1} parent=0
    _
  %s10 = ssub.s32 1, %s8
  %s11 = scalar_select 0, %s10, %s8
  $region1: #{tpu_custom_call.1} parent=0
    #allocation3 [shape = 'u8[2048]{0}', space=vmem, size = 0x800, scoped, tag = 'output window, operand 1']
    #allocation4 [shape = 's32[2]{0}', space=sflag, size = 0x8, scoped, tag = 'scoped memory for tpu_custom_call.1']
    #allocation5 [shape = 'u8[8192]{0}', space=vmem, size = 0x2000, scoped, tag = 'output window, operand 2']
    #allocation6 [shape = 's32[2]{0}', space=sflag, size = 0x8, scoped, tag = 'scoped memory for tpu_custom_call.1']
    #allocation7 [shape = 'u8[2048]{0}', space=vmem, size = 0x800, scoped, tag = 'output window, operand 3']
    %12 = vsyncpa [#allocation4], 0
    %s13 = scalar_lea.sflag [#allocation4], 1
    %14 = vsyncpa %s13, 0
    %15 = vsyncpa [#allocation6], 0
    %s16 = scalar_lea.sflag [#allocation6], 1
    %17 = vsyncpa %s16, 0
    loop: start=0, step=1, limit=50
    $region2: #{tpu_custom_call.1} parent=1 // loop_pre_header
      _
    $region3: #{tpu_custom_call.1} parent=1 // loop_header
      %s19 = sphi 0, %s23
      %p20 = scmp.ge.s32.totalorder %s19, 50
      %s26 = sphi 0, %s45
      %s27 = sphi 0, %s41
      %s28 = sphi 0, %s37
      %s29 = sphi 0, %s26
      %s30 = sphi 0, %s27
      %s31 = sphi 0, %s28
      %s32 = sphi 0, %s29
      %s33 = sphi 0, %s30
      %s34 = sphi 0, %s31
      %s54 = sphi 0, %s56
      %s57 = sphi 0, %s54
      %s58 = sphi 0, %s57
      %s74 = sphi 0, %s58
      %s80 = sphi 0, %s82
      %s83 = sphi 0, %s80
      %s84 = sphi 0, %s83
      %s100 = sphi 0, %s84
      %s104 = sphi 0, %s104
      %s106 = sphi 0, %s104
      %s107 = sphi 0, %s106
      %s121 = sphi 0, %s107
      %s131 = sphi 0, %s133
      %s134 = sphi 0, %s131
      %s135 = sphi 0, %s134
      %s151 = sphi 0, %s135
      %s159 = sphi 0, %s161
      %s162 = sphi 0, %s159
      %s163 = sphi 0, %s162
      %s179 = sphi 0, %s163
      %s187 = sphi 0, %s189
      %s190 = sphi 0, %s187
      %s191 = sphi 0, %s190
      %s207 = sphi 0, %s191
      %s215 = sphi 0, %s217
      %s218 = sphi 0, %s215
      %s219 = sphi 0, %s218
      %s235 = sphi 0, %s219
    $region4: #{tpu_custom_call.1} parent=1 // loop_header_branch
      %22 = sbr.rel (%p20) target = $region8
    $region5: #{tpu_custom_call.1} parent=1 // loop_body
      %s24 = ssub.s32 %s19, 1
      %s25 = ssub.s32 %s19, 2
      %s35 = sadd.s32 1, %s28
      %p36 = scmp.ge.s32.totalorder %s35, 3
      %s37 = scalar_select %p36, 0, %s35
      %s38 = sadd.s32 1, %s27
      %s39 = scalar_select %p36, %s38, %s27
      %p40 = scmp.ge.s32.totalorder %s39, 8
      %s41 = scalar_select %p40, 0, %s39
      %s42 = sadd.s32 1, %s26
      %s43 = scalar_select %p40, %s42, %s26
      %p44 = scmp.ge.s32.totalorder %s43, 2
      %s45 = scalar_select %p44, 0, %s43
      %s46 = smul.u32 %s27, 2
      %s47 = sadd.s32 %s46, %s28
      %s48 = smul.u32 %s41, 2
      %s49 = sadd.s32 %s48, %s37
      %s50 = ssub.s32 %s26, %s45
      %s51 = ssub.s32 %s47, %s49
      %s52 = sor.u32 %s50, %s51
      %p53 = scmp.eq.s32.totalorder %s52, 0
      %s55 = sadd.s32 %s54, 1
      %s56 = scalar_select %p53, %s54, %s55
      %p59 = pneg %p53
      %p60 = scmp.eq.s32.totalorder %s19, 47
      %p61 = por %p59, %p60
      %p62 = scmp.ne.s32.totalorder %s54, %s57
      %p63 = scmp.eq.s32.totalorder %s19, 0
      %p64 = por %p62, %p63
      %p65 = scmp.ne.s32.totalorder %s54, %s57
      %p66 = scmp.eq.s32.totalorder %s24, 47
      %p67 = por %p65, %p66
      %p68 = scmp.ne.s32.totalorder %s57, %s58
      %p69 = scmp.eq.s32.totalorder %s24, 0
      %p70 = por %p68, %p69
      %p71 = scmp.ne.s32.totalorder %s57, %s58
      %p72 = scmp.eq.s32.totalorder %s25, 47
      %p73 = por %p71, %p72
      %p75 = scmp.ne.s32.totalorder %s58, %s74
      %p76 = scmp.eq.s32.totalorder %s25, 0
      %p77 = por %p75, %p76
      %s78 = ssub.s32 %s28, %s37
      %p79 = scmp.eq.s32.totalorder %s78, 0
      %s81 = sadd.s32 %s80, 1
      %s82 = scalar_select %p79, %s80, %s81
      %p85 = pneg %p79
      %p86 = scmp.eq.s32.totalorder %s19, 47
      %p87 = por %p85, %p86
      %p88 = scmp.ne.s32.totalorder %s80, %s83
      %p89 = scmp.eq.s32.totalorder %s19, 0
      %p90 = por %p88, %p89
      %p91 = scmp.ne.s32.totalorder %s80, %s83
      %p92 = scmp.eq.s32.totalorder %s24, 47
      %p93 = por %p91, %p92
      %p94 = scmp.ne.s32.totalorder %s83, %s84
      %p95 = scmp.eq.s32.totalorder %s24, 0
      %p96 = por %p94, %p95
      %p97 = scmp.ne.s32.totalorder %s83, %s84
      %p98 = scmp.eq.s32.totalorder %s25, 47
      %p99 = por %p97, %p98
      %p101 = scmp.ne.s32.totalorder %s84, %s100
      %p102 = scmp.eq.s32.totalorder %s25, 0
      %p103 = por %p101, %p102
      %s105 = sadd.s32 %s104, 1
      %p108 = scmp.eq.s32.totalorder %s19, 47
      %p109 = scmp.ne.s32.totalorder %s104, %s106
      %p110 = scmp.eq.s32.totalorder %s19, 0
      %p111 = por %p109, %p110
      %p112 = scmp.ne.s32.totalorder %s104, %s106
      %p113 = scmp.eq.s32.totalorder %s24, 47
      %p114 = por %p112, %p113
      %p115 = scmp.ne.s32.totalorder %s106, %s107
      %p116 = scmp.eq.s32.totalorder %s24, 0
      %p117 = por %p115, %p116
      %p118 = scmp.ne.s32.totalorder %s106, %s107
      %p119 = scmp.eq.s32.totalorder %s25, 47
      %p120 = por %p118, %p119
      %p122 = scmp.ne.s32.totalorder %s107, %s121
      %p123 = scmp.eq.s32.totalorder %s25, 0
      %p124 = por %p122, %p123
      %s125 = sadd.s32 %s27, 1
      %s126 = sadd.s32 %s41, 1
      %s127 = ssub.s32 %s26, %s45
      %s128 = ssub.s32 %s125, %s126
      %s129 = sor.u32 %s127, %s128
      %p130 = scmp.eq.s32.totalorder %s129, 0
      %s132 = sadd.s32 %s131, 1
      %s133 = scalar_select %p130, %s131, %s132
      %p136 = pneg %p130
      %p137 = scmp.eq.s32.totalorder %s19, 47
      %p138 = por %p136, %p137
      %p139 = scmp.ne.s32.totalorder %s131, %s134
      %p140 = scmp.eq.s32.totalorder %s19, 0
      %p141 = por %p139, %p140
      %p142 = scmp.ne.s32.totalorder %s131, %s134
      %p143 = scmp.eq.s32.totalorder %s24, 47
      %p144 = por %p142, %p143
      %p145 = scmp.ne.s32.totalorder %s134, %s135
      %p146 = scmp.eq.s32.totalorder %s24, 0
      %p147 = por %p145, %p146
      %p148 = scmp.ne.s32.totalorder %s134, %s135
      %p149 = scmp.eq.s32.totalorder %s25, 47
      %p150 = por %p148, %p149
      %p152 = scmp.ne.s32.totalorder %s135, %s151
      %p153 = scmp.eq.s32.totalorder %s25, 0
      %p154 = por %p152, %p153
      %s155 = ssub.s32 %s26, %s45
      %s156 = ssub.s32 %s27, %s41
      %s157 = sor.u32 %s155, %s156
      %p158 = scmp.eq.s32.totalorder %s157, 0
      %s160 = sadd.s32 %s159, 1
      %s161 = scalar_select %p158, %s159, %s160
      %p164 = pneg %p158
      %p165 = scmp.eq.s32.totalorder %s19, 47
      %p166 = por %p164, %p165
      %p167 = scmp.ne.s32.totalorder %s159, %s162
      %p168 = scmp.eq.s32.totalorder %s19, 0
      %p169 = por %p167, %p168
      %p170 = scmp.ne.s32.totalorder %s159, %s162
      %p171 = scmp.eq.s32.totalorder %s24, 47
      %p172 = por %p170, %p171
      %p173 = scmp.ne.s32.totalorder %s162, %s163
      %p174 = scmp.eq.s32.totalorder %s24, 0
      %p175 = por %p173, %p174
      %p176 = scmp.ne.s32.totalorder %s162, %s163
      %p177 = scmp.eq.s32.totalorder %s25, 47
      %p178 = por %p176, %p177
      %p180 = scmp.ne.s32.totalorder %s163, %s179
      %p181 = scmp.eq.s32.totalorder %s25, 0
      %p182 = por %p180, %p181
      %s183 = ssub.s32 %s26, %s45
      %s184 = ssub.s32 %s27, %s41
      %s185 = sor.u32 %s183, %s184
      %p186 = scmp.eq.s32.totalorder %s185, 0
      %s188 = sadd.s32 %s187, 1
      %s189 = scalar_select %p186, %s187, %s188
      %p192 = pneg %p186
      %p193 = scmp.eq.s32.totalorder %s19, 47
      %p194 = por %p192, %p193
      %p195 = scmp.ne.s32.totalorder %s187, %s190
      %p196 = scmp.eq.s32.totalorder %s19, 0
      %p197 = por %p195, %p196
      %p198 = scmp.ne.s32.totalorder %s187, %s190
      %p199 = scmp.eq.s32.totalorder %s24, 47
      %p200 = por %p198, %p199
      %p201 = scmp.ne.s32.totalorder %s190, %s191
      %p202 = scmp.eq.s32.totalorder %s24, 0
      %p203 = por %p201, %p202
      %p204 = scmp.ne.s32.totalorder %s190, %s191
      %p205 = scmp.eq.s32.totalorder %s25, 47
      %p206 = por %p204, %p205
      %p208 = scmp.ne.s32.totalorder %s191, %s207
      %p209 = scmp.eq.s32.totalorder %s25, 0
      %p210 = por %p208, %p209
      %s211 = ssub.s32 %s26, %s45
      %s212 = ssub.s32 %s27, %s41
      %s213 = sor.u32 %s211, %s212
      %p214 = scmp.eq.s32.totalorder %s213, 0
      %s216 = sadd.s32 %s215, 1
      %s217 = scalar_select %p214, %s215, %s216
      %p220 = pneg %p214
      %p221 = scmp.eq.s32.totalorder %s19, 47
      %p222 = por %p220, %p221
      %p223 = scmp.ne.s32.totalorder %s215, %s218
      %p224 = scmp.eq.s32.totalorder %s19, 0
      %p225 = por %p223, %p224
      %p226 = scmp.ne.s32.totalorder %s215, %s218
      %p227 = scmp.eq.s32.totalorder %s24, 47
      %p228 = por %p226, %p227
      %p229 = scmp.ne.s32.totalorder %s218, %s219
      %p230 = scmp.eq.s32.totalorder %s24, 0
      %p231 = por %p229, %p230
      %p232 = scmp.ne.s32.totalorder %s218, %s219
      %p233 = scmp.eq.s32.totalorder %s25, 47
      %p234 = por %p232, %p233
      %p236 = scmp.ne.s32.totalorder %s219, %s235
      %p237 = scmp.eq.s32.totalorder %s25, 0
      %p238 = por %p236, %p237
      %p239 = scmp.le.s32.totalorder 1, %s19
      %p240 = scmp.lt.s32.totalorder %s19, 49
      %p241 = pnand %p239, %p240
      %p242 = pneg %p241
      // Predicated region
      $region9: #{tpu_custom_call.1} parent=5 // pred_check
        _
      $region10: #{tpu_custom_call.1} parent=5 // pred_check_branch
        %244 = sbr.rel (%p241) target = $region12
      $region11: #{tpu_custom_call.1} parent=5 // pred_region
        %s245 = ssub.s32 %s19, 1
        // Predicated region
        $region13: #{tpu_custom_call.1} parent=11 // pred_check
          %p246 = pneg %p117
        $region14: #{tpu_custom_call.1} parent=11 // pred_check_branch
          %248 = sbr.rel (%p246) target = $region16
        $region15: #{tpu_custom_call.1} parent=11 // pred_region
          _
        $region16: #{tpu_custom_call.1} parent=11 // pred_fallthru
          _
      $region12: #{tpu_custom_call.1} parent=5 // pred_fallthru
        _
      %p249 = scmp.lt.s32.totalorder %s19, 48
      // Predicated region
      $region17: #{tpu_custom_call.1} parent=5 // pred_check
        %p250 = pneg %p249
      $region18: #{tpu_custom_call.1} parent=5 // pred_check_branch
        %252 = sbr.rel (%p250) target = $region20
      $region19: #{tpu_custom_call.1} parent=5 // pred_region
        // Predicated region
        $region21: #{tpu_custom_call.1} parent=19 // pred_check
          %p253 = pneg %p64
        $region22: #{tpu_custom_call.1} parent=19 // pred_check_branch
          %255 = sbr.rel (%p253) target = $region24
        $region23: #{tpu_custom_call.1} parent=19 // pred_region
          %s256 = smul.u32 %s27, 2
          %s257 = sadd.s32 %s256, %s28
          %p258 = scmp.lt.s32.totalorder %s26, 1
          %s259 = scalar_select %p258, %s26, 1
          %p260 = scmp.lt.s32.totalorder %s257, 17
          %s261 = scalar_select %p260, %s257, 17
          %s262 = smul.addr %s261, 4
          %s263 = smul.addr %s259, 72
          %s264 = sadd.s32 %s262, %s263
          %s265 = smul.addr %s264, 8
          %s266 = scalar_lea.vmem %s0, %s265
          %s267 = smul.u32 %s27, 2
          %s268 = sadd.s32 %s267, %s28
        $region24: #{tpu_custom_call.1} parent=19 // pred_fallthru
          _
        // Predicated region
        $region25: #{tpu_custom_call.1} parent=19 // pred_check
          %p269 = pneg %p90
        $region26: #{tpu_custom_call.1} parent=19 // pred_check_branch
          %271 = sbr.rel (%p269) target = $region28
        $region27: #{tpu_custom_call.1} parent=19 // pred_region
          %p272 = scmp.lt.s32.totalorder %s28, 2
          %s273 = scalar_select %p272, %s28, 2
          %s274 = smul.addr %s273, 48
          %s275 = smul.addr %s274, 8
          %s276 = scalar_lea.vmem %s1, %s275
        $region28: #{tpu_custom_call.1} parent=19 // pred_fallthru
          _
      $region20: #{tpu_custom_call.1} parent=5 // pred_fallthru
        _
      %p277 = scmp.le.s32.totalorder 1, %s19
      %p278 = scmp.lt.s32.totalorder %s19, 49
      %p279 = pnand %p277, %p278
      %p280 = pneg %p279
      // Predicated region
      $region29: #{tpu_custom_call.1} parent=5 // pred_check
        _
      $region30: #{tpu_custom_call.1} parent=5 // pred_check_branch
        %282 = sbr.rel (%p279) target = $region32
      $region31: #{tpu_custom_call.1} parent=5 // pred_region
        %s283 = ssub.s32 %s19, 1
        %s284 = smul.u32 %s30, 2
        %s285 = sadd.s32 %s284, %s31
        %p286 = scmp.lt.s32.totalorder %s29, 1
        %s287 = scalar_select %p286, %s29, 1
        %p288 = scmp.lt.s32.totalorder %s285, 17
        %s289 = scalar_select %p288, %s285, 17
        %s290 = smul.addr %s289, 4
        %s291 = smul.addr %s287, 72
        %s292 = sadd.s32 %s290, %s291
        %s293 = smul.addr %s292, 8
        %s294 = scalar_lea.vmem %s0, %s293
        %p295 = pneg %p70
        %p296 = pneg %p67
        %p297 = scmp.lt.s32.totalorder %s31, 2
        %s298 = scalar_select %p297, %s31, 2
        %s299 = smul.addr %s298, 48
        %s300 = smul.addr %s299, 8
        %s301 = scalar_lea.vmem %s1, %s300
        %p302 = pneg %p96
        %p303 = pneg %p93
        %p304 = pneg %p117
        %p305 = pneg %p114
        %p306 = pneg %p147
        %p307 = pneg %p144
        %s308 = sadd.s32 %s30, 1
        %p309 = scmp.lt.s32.totalorder %s29, 1
        %s310 = scalar_select %p309, %s29, 1
        %p311 = scmp.lt.s32.totalorder %s308, 9
        %s312 = scalar_select %p311, %s308, 9
        %s313 = smul.addr %s312, 2
        %s314 = smul.addr %s310, 20
        %s315 = sadd.s32 %s313, %s314
        %s316 = smul.addr %s315, 8
        %s317 = scalar_lea.vmem %s3, %s316
        %p318 = pneg %p175
        %p319 = pneg %p172
        %s320 = sand.u32 %s162, 1
        %s321 = scalar_lea.sflag [#allocation4], %s320
        %s322 = sand.u32 %s162, 1
        %s323 = smul.addr %s322, 2
        %s324 = scalar_lea.vmem [#allocation3], %s323
        %p325 = pneg %p203
        %p326 = pneg %p200
        %s327 = sand.u32 %s24, 1
        %s328 = scalar_lea.sflag [#allocation6], %s327
        %s329 = sand.u32 %s190, 1
        %s330 = smul.addr %s329, 8
        %s331 = scalar_lea.vmem [#allocation5], %s330
        %p332 = pneg %p231
        %p333 = pneg %p228
        %s334 = sand.u32 %s24, 1
        %s335 = scalar_lea.sflag [#allocation6], %s334
        %s336 = sand.u32 %s218, 1
        %s337 = smul.addr %s336, 2
        %s338 = scalar_lea.vmem [#allocation7], %s337
        %s339 = smul.u32 %s30, 2
        %s340 = sadd.s32 %s339, %s31
        %p341 = scmp.lt.s32.totalorder %s29, 1
        %s342 = scalar_select %p341, %s29, 1
        %p343 = scmp.lt.s32.totalorder %s340, 17
        %s344 = scalar_select %p343, %s340, 17
        %s345 = smul.addr %s344, 4
        %s346 = smul.addr %s342, 72
        %s347 = sadd.s32 %s345, %s346
        %s348 = smul.addr %s347, 8
        %s349 = scalar_lea.vmem %s0, %s348
        %s350 = smul.u32 %s30, 2
        %s351 = sadd.s32 %s350, %s31
        %p352 = scmp.lt.s32.totalorder %s31, 2
        %s353 = scalar_select %p352, %s31, 2
        %s354 = smul.addr %s353, 48
        %s355 = smul.addr %s354, 8
        %s356 = scalar_lea.vmem %s1, %s355
        %s357 = sadd.s32 %s30, 1
        %p358 = scmp.lt.s32.totalorder %s29, 1
        %s359 = scalar_select %p358, %s29, 1
        %p360 = scmp.lt.s32.totalorder %s357, 9
        %s361 = scalar_select %p360, %s357, 9
        %s362 = smul.addr %s361, 2
        %s363 = smul.addr %s359, 20
        %s364 = sadd.s32 %s362, %s363
        %s365 = smul.addr %s364, 8
        %s366 = scalar_lea.vmem %s3, %s365
        %s367 = sadd.s32 %s30, 1
        %p368 = scmp.eq.s32.totalorder %s31, 0
        // Predicated region
        $region33: #{tpu_custom_call.1} parent=31 // pred_check
          %p369 = pneg %p368
        $region34: #{tpu_custom_call.1} parent=31 // pred_check_branch
          %371 = sbr.rel (%p369) target = $region36
        $region35: #{tpu_custom_call.1} parent=31 // pred_region
          %372 = vst [vmem:[#allocation2] sm:$0xff] 0.0
        $region36: #{tpu_custom_call.1} parent=31 // pred_fallthru
          _
        %v373 = vld [vmem:[%s349] sm:$0xff]
        %v374 = vld [vmem:[#allocation2] sm:$0xff]
        %v375 = vld [vmem:[%s356] sm:$0xff]
        %v376 = vld [vmem:[%s356 + $0x8] sm:$0xff]
        %v377 = vld [vmem:[%s356 + $0x10] sm:$0xff]
        %v378 = vld [vmem:[%s356 + $0x18] sm:$0xff]
        %v379 = vld [vmem:[%s356 + $0x20] sm:$0xff]
        %v380 = vld [vmem:[%s356 + $0x28] sm:$0xff]
        %v381 = vld [vmem:[%s356 + $0x30] sm:$0xff]
        %v382 = vld [vmem:[%s356 + $0x38] sm:$0xff]
        %v383 = vld [vmem:[%s356 + $0x40] sm:$0xff]
        %v384 = vld [vmem:[%s356 + $0x48] sm:$0xff]
        %v385 = vld [vmem:[%s356 + $0x50] sm:$0xff]
        %v386 = vld [vmem:[%s356 + $0x58] sm:$0xff]
        %v387 = vld [vmem:[%s356 + $0x60] sm:$0xff]
        %v388 = vld [vmem:[%s356 + $0x68] sm:$0xff]
        %v389 = vld [vmem:[%s356 + $0x70] sm:$0xff]
        %v390 = vld [vmem:[%s356 + $0x78] sm:$0xff]
        %391 = vmatprep.subr.mxu0 0.0
        %392 = vmatpush1.msra.mxu0 %v375
        %393 = vmatprep.subr.mxu0 0.0
        %394 = vmatpush1.msra.mxu0 %v376
        %395 = vmatprep.subr.mxu0 0.0
        %396 = vmatpush1.msra.mxu0 %v377
        %397 = vmatprep.subr.mxu0 0.0
        %398 = vmatpush1.msra.mxu0 %v378
        %399 = vmatprep.subr.mxu0 0.0
        %400 = vmatpush1.msra.mxu0 %v379
        %401 = vmatprep.subr.mxu0 0.0
        %402 = vmatpush1.msra.mxu0 %v380
        %403 = vmatprep.subr.mxu0 0.0
        %404 = vmatpush1.msra.mxu0 %v381
        %405 = vmatprep.subr.mxu0 0.0
        %406 = vmatpush1.msra.mxu0 %v382
        %407 = vmatprep.subr.mxu0 0.0
        %408 = vmatpush1.msra.mxu0 %v383
        %409 = vmatprep.subr.mxu0 0.0
        %410 = vmatpush1.msra.mxu0 %v384
        %411 = vmatprep.subr.mxu0 0.0
        %412 = vmatpush1.msra.mxu0 %v385
        %413 = vmatprep.subr.mxu0 0.0
        %414 = vmatpush1.msra.mxu0 %v386
        %415 = vmatprep.subr.mxu0 0.0
        %416 = vmatpush1.msra.mxu0 %v387
        %417 = vmatprep.subr.mxu0 0.0
        %418 = vmatpush1.msra.mxu0 %v388
        %419 = vmatprep.subr.mxu0 0.0
        %420 = vmatpush1.msra.mxu0 %v389
        %421 = vmatprep.subr.mxu0 0.0
        %422 = vmatpush1.msra.mxu0 %v390
        %423 = vmatprep.subr.mxu0 0.0
        %424 = vmatpush1.msra.mxu0 0.0
        %425 = vmatprep.subr.mxu0 0.0
        %426 = vmatpush1.msra.mxu0 0.0
        %427 = vmatprep.subr.mxu0 0.0
        %428 = vmatpush1.msra.mxu0 0.0
        %429 = vmatprep.subr.mxu0 0.0
        %430 = vmatpush1.msra.mxu0 0.0
        %431 = vmatprep.subr.mxu0 0.0
        %432 = vmatpush1.msra.mxu0 0.0
        %433 = vmatprep.subr.mxu0 0.0
        %434 = vmatpush1.msra.mxu0 0.0
        %435 = vmatprep.subr.mxu0 0.0
        %436 = vmatpush1.msra.mxu0 0.0
        %437 = vmatprep.subr.mxu0 0.0
        %438 = vmatpush1.msra.mxu0 0.0
        %439 = vmatprep.subr.mxu0 0.0
        %440 = vmatpush1.msra.mxu0 0.0
        %441 = vmatprep.subr.mxu0 0.0
        %442 = vmatpush1.msra.mxu0 0.0
        %443 = vmatprep.subr.mxu0 0.0
        %444 = vmatpush1.msra.mxu0 0.0
        %445 = vmatprep.subr.mxu0 0.0
        %446 = vmatpush1.msra.mxu0 0.0
        %447 = vmatprep.subr.mxu0 0.0
        %448 = vmatpush1.msra.mxu0 0.0
        %449 = vmatprep.subr.mxu0 0.0
        %450 = vmatpush1.msra.mxu0 0.0
        %451 = vmatprep.subr.mxu0 0.0
        %452 = vmatpush1.msra.mxu0 0.0
        %453 = vmatprep.subr.mxu0 0.0
        %454 = vmatpush1.msra.mxu0 0.0
        %455 = vmatprep.mubr.f32.mxu0 0.0
        %456 = vmatmul.mubr.f32.gmra.mrb[0].mxu0 %v373
        %v457 = vpop.f32.mrb[0].mxu0
        %v458 = vadd.f32 0.0, %v457
        %v459 = vpop.f32.mrb[0].mxu0
        %460 = vdwg.mxu0
        %v461 = vadd.f32 %v374, %v458
        %462 = vst [vmem:[#allocation2] sm:$0xff] %v461
        %v463 = vld [vmem:[%s349 + $0x8] sm:$0xff]
        %v464 = vld [vmem:[#allocation2] sm:$0xff]
        %s465 = scalar_lea.vmem %s356, 128
        %v466 = vld [vmem:[%s465] sm:$0xff]
        %v467 = vld [vmem:[%s465 + $0x8] sm:$0xff]
        %v468 = vld [vmem:[%s465 + $0x10] sm:$0xff]
        %v469 = vld [vmem:[%s465 + $0x18] sm:$0xff]
        %v470 = vld [vmem:[%s465 + $0x20] sm:$0xff]
        %v471 = vld [vmem:[%s465 + $0x28] sm:$0xff]
        %v472 = vld [vmem:[%s465 + $0x30] sm:$0xff]
        %v473 = vld [vmem:[%s465 + $0x38] sm:$0xff]
        %v474 = vld [vmem:[%s465 + $0x40] sm:$0xff]
        %v475 = vld [vmem:[%s465 + $0x48] sm:$0xff]
        %v476 = vld [vmem:[%s465 + $0x50] sm:$0xff]
        %v477 = vld [vmem:[%s465 + $0x58] sm:$0xff]
        %v478 = vld [vmem:[%s465 + $0x60] sm:$0xff]
        %v479 = vld [vmem:[%s465 + $0x68] sm:$0xff]
        %v480 = vld [vmem:[%s465 + $0x70] sm:$0xff]
        %v481 = vld [vmem:[%s465 + $0x78] sm:$0xff]
        %482 = vmatprep.subr.mxu0 0.0
        %483 = vmatpush1.msra.mxu0 %v466
        %484 = vmatprep.subr.mxu0 0.0
        %485 = vmatpush1.msra.mxu0 %v467
        %486 = vmatprep.subr.mxu0 0.0
        %487 = vmatpush1.msra.mxu0 %v468
        %488 = vmatprep.subr.mxu0 0.0
        %489 = vmatpush1.msra.mxu0 %v469
        %490 = vmatprep.subr.mxu0 0.0
        %491 = vmatpush1.msra.mxu0 %v470
        %492 = vmatprep.subr.mxu0 0.0
        %493 = vmatpush1.msra.mxu0 %v471
        %494 = vmatprep.subr.mxu0 0.0
        %495 = vmatpush1.msra.mxu0 %v472
        %496 = vmatprep.subr.mxu0 0.0
        %497 = vmatpush1.msra.mxu0 %v473
        %498 = vmatprep.subr.mxu0 0.0
        %499 = vmatpush1.msra.mxu0 %v474
        %500 = vmatprep.subr.mxu0 0.0
        %501 = vmatpush1.msra.mxu0 %v475
        %502 = vmatprep.subr.mxu0 0.0
        %503 = vmatpush1.msra.mxu0 %v476
        %504 = vmatprep.subr.mxu0 0.0
        %505 = vmatpush1.msra.mxu0 %v477
        %506 = vmatprep.subr.mxu0 0.0
        %507 = vmatpush1.msra.mxu0 %v478
        %508 = vmatprep.subr.mxu0 0.0
        %509 = vmatpush1.msra.mxu0 %v479
        %510 = vmatprep.subr.mxu0 0.0
        %511 = vmatpush1.msra.mxu0 %v480
        %512 = vmatprep.subr.mxu0 0.0
        %513 = vmatpush1.msra.mxu0 %v481
        %514 = vmatprep.subr.mxu0 0.0
        %515 = vmatpush1.msra.mxu0 0.0
        %516 = vmatprep.subr.mxu0 0.0
        %517 = vmatpush1.msra.mxu0 0.0
        %518 = vmatprep.subr.mxu0 0.0
        %519 = vmatpush1.msra.mxu0 0.0
        %520 = vmatprep.subr.mxu0 0.0
        %521 = vmatpush1.msra.mxu0 0.0
        %522 = vmatprep.subr.mxu0 0.0
        %523 = vmatpush1.msra.mxu0 0.0
        %524 = vmatprep.subr.mxu0 0.0
        %525 = vmatpush1.msra.mxu0 0.0
        %526 = vmatprep.subr.mxu0 0.0
        %527 = vmatpush1.msra.mxu0 0.0
        %528 = vmatprep.subr.mxu0 0.0
        %529 = vmatpush1.msra.mxu0 0.0
        %530 = vmatprep.subr.mxu0 0.0
        %531 = vmatpush1.msra.mxu0 0.0
        %532 = vmatprep.subr.mxu0 0.0
        %533 = vmatpush1.msra.mxu0 0.0
        %534 = vmatprep.subr.mxu0 0.0
        %535 = vmatpush1.msra.mxu0 0.0
        %536 = vmatprep.subr.mxu0 0.0
        %537 = vmatpush1.msra.mxu0 0.0
        %538 = vmatprep.subr.mxu0 0.0
        %539 = vmatpush1.msra.mxu0 0.0
        %540 = vmatprep.subr.mxu0 0.0
        %541 = vmatpush1.msra.mxu0 0.0
        %542 = vmatprep.subr.mxu0 0.0
        %543 = vmatpush1.msra.mxu0 0.0
        %544 = vmatprep.subr.mxu0 0.0
        %545 = vmatpush1.msra.mxu0 0.0
        %546 = vmatprep.mubr.f32.mxu0 0.0
        %547 = vmatmul.mubr.f32.gmra.mrb[0].mxu0 %v463
        %v548 = vpop.f32.mrb[0].mxu0
        %v549 = vadd.f32 0.0, %v548
        %v550 = vpop.f32.mrb[0].mxu0
        %551 = vdwg.mxu0
        %v552 = vadd.f32 %v464, %v549
        %553 = vst [vmem:[#allocation2] sm:$0xff] %v552
        %v554 = vld [vmem:[%s349] sm:$0xfe]
        %v555 = vld [vmem:[%s349 + $0x10] sm:$0x1]
        %v556 = vld [vmem:[#allocation2] sm:$0xff]
        %s557 = scalar_lea.vmem %s356, 256
        %v558 = vld [vmem:[%s557] sm:$0xff]
        %v559 = vld [vmem:[%s557 + $0x8] sm:$0xff]
        %v560 = vld [vmem:[%s557 + $0x10] sm:$0xff]
        %v561 = vld [vmem:[%s557 + $0x18] sm:$0xff]
        %v562 = vld [vmem:[%s557 + $0x20] sm:$0xff]
        %v563 = vld [vmem:[%s557 + $0x28] sm:$0xff]
        %v564 = vld [vmem:[%s557 + $0x30] sm:$0xff]
        %v565 = vld [vmem:[%s557 + $0x38] sm:$0xff]
        %v566 = vld [vmem:[%s557 + $0x40] sm:$0xff]
        %v567 = vld [vmem:[%s557 + $0x48] sm:$0xff]
        %v568 = vld [vmem:[%s557 + $0x50] sm:$0xff]
        %v569 = vld [vmem:[%s557 + $0x58] sm:$0xff]
        %v570 = vld [vmem:[%s557 + $0x60] sm:$0xff]
        %v571 = vld [vmem:[%s557 + $0x68] sm:$0xff]
        %v572 = vld [vmem:[%s557 + $0x70] sm:$0xff]
        %v573 = vld [vmem:[%s557 + $0x78] sm:$0xff]
        %vm576 = vcmask 1046528
        %v577 = vrot.slane %v554, 1
        %v578 = vrot.slane %v555, 1
        %v579 = vsel %vm576, %v577, %v578
        %581 = vmatprep.subr.mxu0 0.0
        %582 = vmatpush1.msra.mxu0 %v558
        %583 = vmatprep.subr.mxu0 0.0
        %584 = vmatpush1.msra.mxu0 %v559
        %585 = vmatprep.subr.mxu0 0.0
        %586 = vmatpush1.msra.mxu0 %v560
        %587 = vmatprep.subr.mxu0 0.0
        %588 = vmatpush1.msra.mxu0 %v561
        %589 = vmatprep.subr.mxu0 0.0
        %590 = vmatpush1.msra.mxu0 %v562
        %591 = vmatprep.subr.mxu0 0.0
        %592 = vmatpush1.msra.mxu0 %v563
        %593 = vmatprep.subr.mxu0 0.0
        %594 = vmatpush1.msra.mxu0 %v564
        %595 = vmatprep.subr.mxu0 0.0
        %596 = vmatpush1.msra.mxu0 %v565
        %597 = vmatprep.subr.mxu0 0.0
        %598 = vmatpush1.msra.mxu0 %v566
        %599 = vmatprep.subr.mxu0 0.0
        %600 = vmatpush1.msra.mxu0 %v567
        %601 = vmatprep.subr.mxu0 0.0
        %602 = vmatpush1.msra.mxu0 %v568
        %603 = vmatprep.subr.mxu0 0.0
        %604 = vmatpush1.msra.mxu0 %v569
        %605 = vmatprep.subr.mxu0 0.0
        %606 = vmatpush1.msra.mxu0 %v570
        %607 = vmatprep.subr.mxu0 0.0
        %608 = vmatpush1.msra.mxu0 %v571
        %609 = vmatprep.subr.mxu0 0.0
        %610 = vmatpush1.msra.mxu0 %v572
        %611 = vmatprep.subr.mxu0 0.0
        %612 = vmatpush1.msra.mxu0 %v573
        %613 = vmatprep.subr.mxu0 0.0
        %614 = vmatpush1.msra.mxu0 0.0
        %615 = vmatprep.subr.mxu0 0.0
        %616 = vmatpush1.msra.mxu0 0.0
        %617 = vmatprep.subr.mxu0 0.0
        %618 = vmatpush1.msra.mxu0 0.0
        %619 = vmatprep.subr.mxu0 0.0
        %620 = vmatpush1.msra.mxu0 0.0
        %621 = vmatprep.subr.mxu0 0.0
        %622 = vmatpush1.msra.mxu0 0.0
        %623 = vmatprep.subr.mxu0 0.0
        %624 = vmatpush1.msra.mxu0 0.0
        %625 = vmatprep.subr.mxu0 0.0
        %626 = vmatpush1.msra.mxu0 0.0
        %627 = vmatprep.subr.mxu0 0.0
        %628 = vmatpush1.msra.mxu0 0.0
        %629 = vmatprep.subr.mxu0 0.0
        %630 = vmatpush1.msra.mxu0 0.0
        %631 = vmatprep.subr.mxu0 0.0
        %632 = vmatpush1.msra.mxu0 0.0
        %633 = vmatprep.subr.mxu0 0.0
        %634 = vmatpush1.msra.mxu0 0.0
        %635 = vmatprep.subr.mxu0 0.0
        %636 = vmatpush1.msra.mxu0 0.0
        %637 = vmatprep.subr.mxu0 0.0
        %638 = vmatpush1.msra.mxu0 0.0
        %639 = vmatprep.subr.mxu0 0.0
        %640 = vmatpush1.msra.mxu0 0.0
        %641 = vmatprep.subr.mxu0 0.0
        %642 = vmatpush1.msra.mxu0 0.0
        %643 = vmatprep.subr.mxu0 0.0
        %644 = vmatpush1.msra.mxu0 0.0
        %645 = vmatprep.mubr.f32.mxu0 0.0
        %646 = vmatmul.mubr.f32.gmra.mrb[0].mxu0 %v579
        %v647 = vpop.f32.mrb[0].mxu0
        %v648 = vadd.f32 0.0, %v647
        %v649 = vpop.f32.mrb[0].mxu0
        %650 = vdwg.mxu0
        %v651 = vadd.f32 %v556, %v648
        %652 = vst [vmem:[#allocation2] sm:$0xff] %v651
        %p653 = scmp.eq.s32.totalorder %s31, 1
        // Predicated region
        $region37: #{tpu_custom_call.1} parent=31 // pred_check
          %p654 = pneg %p653
        $region38: #{tpu_custom_call.1} parent=31 // pred_check_branch
          %656 = sbr.rel (%p654) target = $region40
        $region39: #{tpu_custom_call.1} parent=31 // pred_region
          %v657 = vld [vmem:[%s349 + $0x8] sm:$0xff]
          %v658 = vld [vmem:[%s2] sm:$0xff]
          %v659 = vld [vmem:[%s2 + $0x8] sm:$0xff]
          %v660 = vld [vmem:[%s2 + $0x10] sm:$0xff]
          %v661 = vld [vmem:[%s2 + $0x18] sm:$0xff]
          %v662 = vld [vmem:[%s2 + $0x20] sm:$0xff]
          %v663 = vld [vmem:[%s2 + $0x28] sm:$0xff]
          %v664 = vld [vmem:[%s2 + $0x30] sm:$0xff]
          %v665 = vld [vmem:[%s2 + $0x38] sm:$0xff]
          %v666 = vld [vmem:[%s2 + $0x40] sm:$0xff]
          %v667 = vld [vmem:[%s2 + $0x48] sm:$0xff]
          %v668 = vld [vmem:[%s2 + $0x50] sm:$0xff]
          %v669 = vld [vmem:[%s2 + $0x58] sm:$0xff]
          %v670 = vld [vmem:[%s2 + $0x60] sm:$0xff]
          %v671 = vld [vmem:[%s2 + $0x68] sm:$0xff]
          %v672 = vld [vmem:[%s2 + $0x70] sm:$0xff]
          %v673 = vld [vmem:[%s2 + $0x78] sm:$0xff]
          %674 = vmatprep.subr.mxu0 0.0
          %675 = vmatpush1.msra.mxu0 %v658
          %676 = vmatprep.subr.mxu0 0.0
          %677 = vmatpush1.msra.mxu0 %v659
          %678 = vmatprep.subr.mxu0 0.0
          %679 = vmatpush1.msra.mxu0 %v660
          %680 = vmatprep.subr.mxu0 0.0
          %681 = vmatpush1.msra.mxu0 %v661
          %682 = vmatprep.subr.mxu0 0.0
          %683 = vmatpush1.msra.mxu0 %v662
          %684 = vmatprep.subr.mxu0 0.0
          %685 = vmatpush1.msra.mxu0 %v663
          %686 = vmatprep.subr.mxu0 0.0
          %687 = vmatpush1.msra.mxu0 %v664
          %688 = vmatprep.subr.mxu0 0.0
          %689 = vmatpush1.msra.mxu0 %v665
          %690 = vmatprep.subr.mxu0 0.0
          %691 = vmatpush1.msra.mxu0 %v666
          %692 = vmatprep.subr.mxu0 0.0
          %693 = vmatpush1.msra.mxu0 %v667
          %694 = vmatprep.subr.mxu0 0.0
          %695 = vmatpush1.msra.mxu0 %v668
          %696 = vmatprep.subr.mxu0 0.0
          %697 = vmatpush1.msra.mxu0 %v669
          %698 = vmatprep.subr.mxu0 0.0
          %699 = vmatpush1.msra.mxu0 %v670
          %700 = vmatprep.subr.mxu0 0.0
          %701 = vmatpush1.msra.mxu0 %v671
          %702 = vmatprep.subr.mxu0 0.0
          %703 = vmatpush1.msra.mxu0 %v672
          %704 = vmatprep.subr.mxu0 0.0
          %705 = vmatpush1.msra.mxu0 %v673
          %706 = vmatprep.subr.mxu0 0.0
          %707 = vmatpush1.msra.mxu0 0.0
          %708 = vmatprep.subr.mxu0 0.0
          %709 = vmatpush1.msra.mxu0 0.0
          %710 = vmatprep.subr.mxu0 0.0
          %711 = vmatpush1.msra.mxu0 0.0
          %712 = vmatprep.subr.mxu0 0.0
          %713 = vmatpush1.msra.mxu0 0.0
          %714 = vmatprep.subr.mxu0 0.0
          %715 = vmatpush1.msra.mxu0 0.0
          %716 = vmatprep.subr.mxu0 0.0
          %717 = vmatpush1.msra.mxu0 0.0
          %718 = vmatprep.subr.mxu0 0.0
          %719 = vmatpush1.msra.mxu0 0.0
          %720 = vmatprep.subr.mxu0 0.0
          %721 = vmatpush1.msra.mxu0 0.0
          %722 = vmatprep.subr.mxu0 0.0
          %723 = vmatpush1.msra.mxu0 0.0
          %724 = vmatprep.subr.mxu0 0.0
          %725 = vmatpush1.msra.mxu0 0.0
          %726 = vmatprep.subr.mxu0 0.0
          %727 = vmatpush1.msra.mxu0 0.0
          %728 = vmatprep.subr.mxu0 0.0
          %729 = vmatpush1.msra.mxu0 0.0
          %730 = vmatprep.subr.mxu0 0.0
          %731 = vmatpush1.msra.mxu0 0.0
          %732 = vmatprep.subr.mxu0 0.0
          %733 = vmatpush1.msra.mxu0 0.0
          %734 = vmatprep.subr.mxu0 0.0
          %735 = vmatpush1.msra.mxu0 0.0
          %736 = vmatprep.subr.mxu0 0.0
          %737 = vmatpush1.msra.mxu0 0.0
          %738 = vmatprep.mubr.f32.mxu0 0.0
          %739 = vmatmul.mubr.f32.gmra.mrb[0].mxu0 %v657
          %v740 = vpop.f32.mrb[0].mxu0
          %v741 = vadd.f32 0.0, %v740
          %v742 = vpop.f32.mrb[0].mxu0
          %743 = vdwg.mxu0
          %744 = vst [vmem:[%s331] sm:$0xff] %v741
          %v745 = vrot.slane %v741, 4
          %v746 = vadd.f32 %v741, %v745
          %v747 = vrot.slane %v746, 2
          %v748 = vadd.f32 %v746, %v747
          %v749 = vrot.slane %v748, 1
          %v750 = vadd.f32 %v748, %v749
          %751 = vst [vmem:[%s338] sm:$0x1] %v750
          %v752 = vmul.f32 %v741, %v741
          %v753 = vrot.slane %v752, 4
          %v754 = vadd.f32 %v752, %v753
          %v755 = vrot.slane %v754, 2
          %v756 = vadd.f32 %v754, %v755
          %v757 = vrot.slane %v756, 1
          %v758 = vadd.f32 %v756, %v757
          %759 = vst [vmem:[%s338 + $0x1] sm:$0x1] %v758
        $region40: #{tpu_custom_call.1} parent=31 // pred_fallthru
          _
        %p760 = scmp.eq.s32.totalorder %s31, 2
        // Predicated region
        $region41: #{tpu_custom_call.1} parent=31 // pred_check
          %p761 = pneg %p760
        $region42: #{tpu_custom_call.1} parent=31 // pred_check_branch
          %763 = sbr.rel (%p761) target = $region44
        $region43: #{tpu_custom_call.1} parent=31 // pred_region
          %v764 = vld [vmem:[#allocation2] sm:$0xff]
          %765 = vst [vmem:[%s366 + $0x1] sm:$0xff] %v764
          %v766 = vrot.slane %v764, 4
          %v767 = vadd.f32 %v764, %v766
          %v768 = vrot.slane %v767, 2
          %v769 = vadd.f32 %v767, %v768
          %v770 = vrot.slane %v769, 1
          %v771 = vadd.f32 %v769, %v770
          %772 = vst [vmem:[%s324] sm:$0x1] %v771
          %v773 = vmul.f32 %v764, %v764
          %v774 = vrot.slane %v773, 4
          %v775 = vadd.f32 %v773, %v774
          %v776 = vrot.slane %v775, 2
          %v777 = vadd.f32 %v775, %v776
          %v778 = vrot.slane %v777, 1
          %v779 = vadd.f32 %v777, %v778
          %780 = vst [vmem:[%s324 + $0x1] sm:$0x1] %v779
        $region44: #{tpu_custom_call.1} parent=31 // pred_fallthru
          _
        %s781 = sadd.s32 %s30, 1
        %p782 = scmp.lt.s32.totalorder %s29, 1
        %s783 = scalar_select %p782, %s29, 1
        %p784 = scmp.lt.s32.totalorder %s781, 9
        %s785 = scalar_select %p784, %s781, 9
        %s786 = smul.addr %s785, 2
        %s787 = smul.addr %s783, 20
        %s788 = sadd.s32 %s786, %s787
        %s789 = smul.addr %s788, 8
        %s790 = scalar_lea.vmem %s3, %s789
        %s791 = sand.u32 %s162, 1
        %s792 = scalar_lea.sflag [#allocation4], %s791
        %s793 = sand.u32 %s162, 1
        %s794 = smul.addr %s793, 2
        %s795 = scalar_lea.vmem [#allocation3], %s794
        %s796 = sand.u32 %s24, 1
        %s797 = scalar_lea.sflag [#allocation6], %s796
        %s798 = sand.u32 %s190, 1
        %s799 = smul.addr %s798, 8
        %s800 = scalar_lea.vmem [#allocation5], %s799
        %s801 = sand.u32 %s24, 1
        %s802 = scalar_lea.sflag [#allocation6], %s801
        %s803 = sand.u32 %s218, 1
        %s804 = smul.addr %s803, 2
        %s805 = scalar_lea.vmem [#allocation7], %s804
        // Predicated region
        $region45: #{tpu_custom_call.1} parent=31 // pred_check
          %p806 = pneg %p144
        $region46: #{tpu_custom_call.1} parent=31 // pred_check_branch
          %808 = sbr.rel (%p806) target = $region48
        $region47: #{tpu_custom_call.1} parent=31 // pred_region
          %s809 = sadd.s32 %s30, 1
        $region48: #{tpu_custom_call.1} parent=31 // pred_fallthru
          _
        // Predicated region
        $region49: #{tpu_custom_call.1} parent=31 // pred_check
          %p810 = pneg %p172
        $region50: #{tpu_custom_call.1} parent=31 // pred_check_branch
          %812 = sbr.rel (%p810) target = $region52
        $region51: #{tpu_custom_call.1} parent=31 // pred_region
          %s814 = ssub.s32 32, 32
          %815 = vsyncadd %s792, %s814
          %s816 = smul.addr %s29, 8
          %s817 = sadd.s32 %s30, %s816
          %s818 = smul.addr %s817, 32
          %s819 = scalar_lea.hbm %s4, %s818
          %s821 = sshll.u32 %s795, 4
          %s822 = int_to_ptr.vmem [resolvable:$true] %s821
          %824 = dma.vmem_to_hbm [thread:$0]  %s822, 32, %s819, %s792
        $region52: #{tpu_custom_call.1} parent=31 // pred_fallthru
          _
        // Predicated region
        $region53: #{tpu_custom_call.1} parent=31 // pred_check
          %p825 = pneg %p200
        $region54: #{tpu_custom_call.1} parent=31 // pred_check_branch
          %827 = sbr.rel (%p825) target = $region56
        $region55: #{tpu_custom_call.1} parent=31 // pred_region
          %s829 = ssub.s32 128, 128
          %830 = vsyncadd %s797, %s829
          %s831 = smul.addr %s29, 8
          %s832 = sadd.s32 %s30, %s831
          %s833 = smul.addr %s832, 128
          %s834 = scalar_lea.hbm %s5, %s833
          %s836 = sshll.u32 %s800, 4
          %s837 = int_to_ptr.vmem [resolvable:$true] %s836
          %839 = dma.vmem_to_hbm [thread:$0]  %s837, 128, %s834, %s797
        $region56: #{tpu_custom_call.1} parent=31 // pred_fallthru
          _
        // Predicated region
        $region57: #{tpu_custom_call.1} parent=31 // pred_check
          %p840 = pneg %p228
        $region58: #{tpu_custom_call.1} parent=31 // pred_check_branch
          %842 = sbr.rel (%p840) target = $region60
        $region59: #{tpu_custom_call.1} parent=31 // pred_region
          %s844 = ssub.s32 32, 32
          %845 = vsyncadd %s802, %s844
          %s846 = smul.addr %s29, 8
          %s847 = sadd.s32 %s30, %s846
          %s848 = smul.addr %s847, 32
          %s849 = scalar_lea.hbm %s6, %s848
          %s851 = sshll.u32 %s805, 4
          %s852 = int_to_ptr.vmem [resolvable:$true] %s851
          %854 = dma.vmem_to_hbm [thread:$0]  %s852, 32, %s849, %s802
        $region60: #{tpu_custom_call.1} parent=31 // pred_fallthru
          _
      $region32: #{tpu_custom_call.1} parent=5 // pred_fallthru
        _
      %p855 = scmp.le.s32.totalorder 2, %s19
      // Predicated region
      $region61: #{tpu_custom_call.1} parent=5 // pred_check
        %p856 = pneg %p855
      $region62: #{tpu_custom_call.1} parent=5 // pred_check_branch
        %858 = sbr.rel (%p856) target = $region64
      $region63: #{tpu_custom_call.1} parent=5 // pred_region
        %s859 = ssub.s32 %s19, 2
        // Predicated region
        $region65: #{tpu_custom_call.1} parent=63 // pred_check
          %p860 = pneg %p150
        $region66: #{tpu_custom_call.1} parent=63 // pred_check_branch
          %862 = sbr.rel (%p860) target = $region68
        $region67: #{tpu_custom_call.1} parent=63 // pred_region
          %s863 = sadd.s32 %s33, 1
          %p864 = scmp.lt.s32.totalorder %s32, 1
          %s865 = scalar_select %p864, %s32, 1
          %p866 = scmp.lt.s32.totalorder %s863, 9
          %s867 = scalar_select %p866, %s863, 9
          %s868 = smul.addr %s867, 2
          %s869 = smul.addr %s865, 20
          %s870 = sadd.s32 %s868, %s869
          %s871 = smul.addr %s870, 8
          %s872 = scalar_lea.vmem %s3, %s871
        $region68: #{tpu_custom_call.1} parent=63 // pred_fallthru
          _
        // Predicated region
        $region69: #{tpu_custom_call.1} parent=63 // pred_check
          %p873 = pneg %p178
        $region70: #{tpu_custom_call.1} parent=63 // pred_check_branch
          %875 = sbr.rel (%p873) target = $region72
        $region71: #{tpu_custom_call.1} parent=63 // pred_region
          %s876 = sand.u32 %s163, 1
          %s877 = scalar_lea.sflag [#allocation4], %s876
          %s878 = sand.u32 %s163, 1
          %s879 = smul.addr %s878, 2
          %s880 = scalar_lea.vmem [#allocation3], %s879
          %881 = dma.done %s877, 32
        $region72: #{tpu_custom_call.1} parent=63 // pred_fallthru
          _
        // Predicated region
        $region73: #{tpu_custom_call.1} parent=63 // pred_check
          %p882 = pneg %p206
        $region74: #{tpu_custom_call.1} parent=63 // pred_check_branch
          %884 = sbr.rel (%p882) target = $region76
        $region75: #{tpu_custom_call.1} parent=63 // pred_region
          %s885 = sand.u32 %s25, 1
          %s886 = scalar_lea.sflag [#allocation6], %s885
          %s887 = sand.u32 %s191, 1
          %s888 = smul.addr %s887, 8
          %s889 = scalar_lea.vmem [#allocation5], %s888
          %890 = dma.done %s886, 128
        $region76: #{tpu_custom_call.1} parent=63 // pred_fallthru
          _
        // Predicated region
        $region77: #{tpu_custom_call.1} parent=63 // pred_check
          %p891 = pneg %p234
        $region78: #{tpu_custom_call.1} parent=63 // pred_check_branch
          %893 = sbr.rel (%p891) target = $region80
        $region79: #{tpu_custom_call.1} parent=63 // pred_region
          %s894 = sand.u32 %s25, 1
          %s895 = scalar_lea.sflag [#allocation6], %s894
          %s896 = sand.u32 %s219, 1
          %s897 = smul.addr %s896, 2
          %s898 = scalar_lea.vmem [#allocation7], %s897
          %899 = dma.done %s895, 32
        $region80: #{tpu_custom_call.1} parent=63 // pred_fallthru
          _
      $region64: #{tpu_custom_call.1} parent=5 // pred_fallthru
        _
    $region6: #{tpu_custom_call.1} parent=1 // loop_footer
      %s23 = sadd.s32 1, %s19
    $region7: #{tpu_custom_call.1} parent=1 // loop_footer_branch
      %18 = sbr.rel target = $region3
    $region8: #{tpu_custom_call.1} parent=1 // loop_exit
      _
    %900 = vsyncpa [#allocation4], 1
    %s901 = scalar_lea.sflag [#allocation4], 1
    %902 = vsyncpa %s901, 1
    %903 = vsyncpa [#allocation6], 1
    %s904 = scalar_lea.sflag [#allocation6], 1
    %905 = vsyncpa %s904, 1

</llo_original>
